<compile_context>
chip_gen: v6e
topology: v6e:2x2x1
jax: 0.10.0
libtpu: 0.0.40
codegen_flags: <defaults>
</compile_context>

<pallas_src>
import functools

import jax
import jax.numpy as jnp
from jax import lax
from jax.experimental import pallas as pl
from jax.experimental.pallas import tpu as pltpu


def _round_up(x, m):
    return ((x + m - 1) // m) * m


def _mlp_kernel(tok_ref, m1_ref, b1_ref, w2_ref, b2_ref, w3_ref, b3_ref,
                o_ref, *, activation, vocab_pad):
    """Fused (emb folded into layer-1) one-hot gather + 3-layer MLP.

    Each grid step produces one (batch_tile, vocab_tile) block of logits.
    """
    if activation == "relu":
        act = lambda v: jnp.maximum(v, 0.0)
    elif activation == "tanh":
        act = jnp.tanh
    else:
        raise ValueError(f"unsupported activation: {activation}")

    tok = tok_ref[...]                         # (Bt, T) int32
    bt, n_pos = tok.shape

    # One-hot selection of the folded emb@W1 table, built directly in bf16
    # (exact: 0.0 / 1.0) and concatenated along lanes so layer 1 is a single
    # K = T*Vp matmul on the MXU.
    lane_ids = lax.broadcasted_iota(jnp.int32, (bt, vocab_pad), 1)
    onehot = jnp.concatenate(
        [(tok[:, t:t + 1] == lane_ids).astype(m1_ref.dtype)
         for t in range(n_pos)], axis=-1)      # (Bt, T*Vp) bf16

    h1 = jnp.dot(onehot, m1_ref[...], preferred_element_type=jnp.float32)
    h1 = act(h1 + b1_ref[...])                 # (Bt, H1p) f32

    h2 = jnp.dot(h1.astype(w2_ref.dtype), w2_ref[...],
                 preferred_element_type=jnp.float32) + b2_ref[...]
    h2 = act(h2)                               # (Bt, H2p) f32

    logits = jnp.dot(h2.astype(w3_ref.dtype), w3_ref[...],
                     preferred_element_type=jnp.float32) + b3_ref[...]
    o_ref[...] = logits.astype(o_ref.dtype)    # (Bt, Vt)


def next_token_forward(tokens, params, *, activation="relu",
                       max_batch_tile=256, max_vocab_tile=2048,
                       out_dtype=jnp.float32):
    """Forward pass of NextToken.

    tokens: int32 (batch, block_size), values in [0, vocab_size).
    params: dict with emb (V, E) and w1/b1, w2/b2, w3/b3 in PyTorch Linear
            layout (w*: (out, in), b*: (out,)).

    Notes:
      * max_batch_tile=256 targets v6e/v7x's 2x256x256 MXU; prefer 128 on v5e.
      * out_dtype=jnp.bfloat16 halves the (B, V) logits writeback (useful on
        bandwidth-poor v5e once V is large).
      * Out-of-range token ids (>= V) select a zero (padded) row instead of
        erroring like torch.nn.Embedding.
    """
    emb = params["emb"]
    V, E = emb.shape
    B, T = tokens.shape
    H1 = params["w1"].shape[0]
    H2 = params["w2"].shape[0]
    assert params["w1"].shape[1] == T * E

    H1p = _round_up(H1, 128)
    H2p = _round_up(H2, 128)

    # Vocab tiling: Vt is a lane multiple and Vp a multiple of Vt so the
    # W3 / b3 / output blocks tile exactly.  Vt is kept modest so per-step
    # VMEM (W3 block + double-buffered output + resident small weights) stays
    # far below v7x's 64 MiB physical VMEM (and v5e/v6e's 128 MiB).
    Vt = min(max_vocab_tile, _round_up(V, 128))
    Vp = _round_up(V, Vt)

    # Right-size the batch tile (sublane multiple of 8); do not pad a tiny
    # batch up to 128/256.  If the whole grid would be a single step, halve
    # the batch tile so v7x's second TensorCore is not idle.
    B8 = _round_up(B, 8)
    batch_tile = min(max_batch_tile, B8)
    if (Vp // Vt) < 2 and (B8 // batch_tile) < 2 and batch_tile > 8:
        batch_tile = _round_up((batch_tile + 1) // 2, 8)
    Bp = _round_up(B, batch_tile)

    bf16 = jnp.bfloat16
    f32 = jnp.float32

    tok_p = jnp.pad(tokens.astype(jnp.int32), ((0, Bp - B), (0, 0)))

    # Fold the embedding into layer 1 (f32 precompute, single bf16 cast):
    #   M1[t, v, h] = sum_e emb[v, e] * W1[h, t*E + e]
    # In-kernel:  h1[b] = sum_t M1[t, tok[b, t], :]  ==  onehot @ M1_flat.
    # TODO(synk): for large vocabularies (T*Vp*H1p table no longer small /
    # one-hot cost ~O(V)), switch to a real gather: scalar-prefetch token ids
    # and pull embedding rows via pl.Element index_map or manual DMA from an
    # HBM-resident emb (memory_space=pl.ANY).
    w1t = params["w1"].astype(f32).T.reshape(T, E, H1)            # (T, E, H1)
    m1 = jnp.einsum("ve,teh->tvh", emb.astype(f32), w1t)          # (T, V, H1)
    m1_p = jnp.pad(m1, ((0, 0), (0, Vp - V), (0, H1p - H1)))
    m1_p = m1_p.reshape(T * Vp, H1p).astype(bf16)                 # (T*Vp, H1p)

    b1_p = jnp.pad(params["b1"], (0, H1p - H1)).reshape(1, H1p).astype(f32)
    w2_p = jnp.pad(params["w2"].T, ((0, H1p - H1), (0, H2p - H2))).astype(bf16)
    b2_p = jnp.pad(params["b2"], (0, H2p - H2)).reshape(1, H2p).astype(f32)
    w3_p = jnp.pad(params["w3"].T, ((0, H2p - H2), (0, Vp - V))).astype(bf16)
    b3_p = jnp.pad(params["b3"], (0, Vp - V)).reshape(1, Vp).astype(f32)

    # Vocab axis is the OUTER grid dim: W3's block index depends only on it,
    # so each W3 block is fetched from HBM exactly once.
    grid = (Vp // Vt, Bp // batch_tile)
    kernel = functools.partial(_mlp_kernel, activation=activation,
                               vocab_pad=Vp)

    out = pl.pallas_call(
        kernel,
        out_shape=jax.ShapeDtypeStruct((Bp, Vp), out_dtype),
        grid_spec=pltpu.PrefetchScalarGridSpec(
            num_scalar_prefetch=0,
            grid=grid,
            in_specs=[
                pl.BlockSpec((batch_tile, T), lambda vi, bi: (bi, 0)),   # ids
                pl.BlockSpec((T * Vp, H1p), lambda vi, bi: (0, 0)),      # M1
                pl.BlockSpec((1, H1p), lambda vi, bi: (0, 0)),           # b1
                pl.BlockSpec((H1p, H2p), lambda vi, bi: (0, 0)),         # W2
                pl.BlockSpec((1, H2p), lambda vi, bi: (0, 0)),           # b2
                pl.BlockSpec((H2p, Vt), lambda vi, bi: (0, vi)),         # W3
                pl.BlockSpec((1, Vt), lambda vi, bi: (0, vi)),           # b3
            ],
            out_specs=pl.BlockSpec((batch_tile, Vt), lambda vi, bi: (bi, vi)),
        ),
        compiler_params=pltpu.CompilerParams(
            dimension_semantics=("parallel", "parallel"),
            # Well under v7x's 64 MiB physical VMEM (<=~48 MiB budget there);
            # current resident blocks are < 1 MiB.
            vmem_limit_bytes=32 * 1024 * 1024,
        ),
    )(tok_p, m1_p, b1_p, w2_p, b2_p, w3_p, b3_p)
    return out[:B, :V]


def init_params(key, *, vocab_size, emb_dim, block_size, hidden_size_1,
                hidden_size_2):
    """Deterministic synthetic parameter init (PyTorch Linear layout)."""
    ks = jax.random.split(key, 7)
    d_in = block_size * emb_dim

    def lin(kw, kb, fan_in, fan_out):
        bound = 1.0 / jnp.sqrt(fan_in)
        w = jax.random.uniform(kw, (fan_out, fan_in), jnp.float32, -bound, bound)
        b = jax.random.uniform(kb, (fan_out,), jnp.float32, -bound, bound)
        return w, b

    emb = jax.random.normal(ks[0], (vocab_size, emb_dim), jnp.float32)
    w1, b1 = lin(ks[1], ks[2], d_in, hidden_size_1)
    w2, b2 = lin(ks[3], ks[4], hidden_size_1, hidden_size_2)
    w3, b3 = lin(ks[5], ks[6], hidden_size_2, vocab_size)
    return {"emb": emb, "w1": w1, "b1": b1, "w2": w2, "b2": b2,
            "w3": w3, "b3": b3}


def _reference(tokens, params, activation):
    act = (lambda v: jnp.maximum(v, 0.0)) if activation == "relu" else jnp.tanh
    x = jnp.take(params["emb"], tokens, axis=0)
    x = x.reshape(x.shape[0], -1)
    x = act(x @ params["w1"].T + params["b1"])
    x = act(x @ params["w2"].T + params["b2"])
    return x @ params["w3"].T + params["b3"]


if __name__ == "__main__":
    # Small shapes consistent with the module's forward.
    block_size = 5
    vocab_size = 128
    emb_dim = 64
    hidden_size_1 = 64
    hidden_size_2 = 32
    batch = 16
    activation = "relu"

    key = jax.random.PRNGKey(0)
    k_param, k_tok = jax.random.split(key)
    params = init_params(k_param, vocab_size=vocab_size, emb_dim=emb_dim,
                         block_size=block_size, hidden_size_1=hidden_size_1,
                         hidden_size_2=hidden_size_2)
    tokens = jax.random.randint(k_tok, (batch, block_size), 0, vocab_size,
                                dtype=jnp.int32)

    out = next_token_forward(tokens, params, activation=activation)
    out = jax.block_until_ready(out)

    ref = _reference(tokens, params, activation)
    assert out.shape == (batch, vocab_size)
    # bf16 MXU inputs with f32 accumulation -> loosened tolerance vs f32 ref.
    err = float(jnp.max(jnp.abs(out - ref)))
    assert err < 1e-1, f"mismatch vs JAX reference: max abs err {err}"

    print("KERNEL_OK")
</pallas_src>

<mosaic_0001>
module attributes {stable_mosaic.version = 11 : i64} {
  func.func @_mlp_kernel(%arg0: i32, %arg1: i32, %arg2: memref<8x5xi32, #tpu.memory_space<vmem>>, %arg3: memref<640x128xbf16, #tpu.memory_space<vmem>>, %arg4: memref<1x128xf32, #tpu.memory_space<vmem>>, %arg5: memref<128x128xbf16, #tpu.memory_space<vmem>>, %arg6: memref<1x128xf32, #tpu.memory_space<vmem>>, %arg7: memref<128x128xbf16, #tpu.memory_space<vmem>>, %arg8: memref<1x128xf32, #tpu.memory_space<vmem>>, %arg9: memref<8x128xf32, #tpu.memory_space<vmem>>) attributes {dimension_semantics = [#tpu.dimension_semantics<parallel>, #tpu.dimension_semantics<parallel>], iteration_bounds = array<i64: 1, 2>, scalar_prefetch = 0 : i64, scratch_operands = 0 : i64, tpu.core_type = #tpu.core_type<tc>, window_params = [{transform_indices = @transform_0, window_bounds = array<i64: 8, 5>}, {pipeline_mode = #tpu.pipeline_mode<synchronous>, transform_indices = @transform_1, window_bounds = array<i64: 640, 128>}, {pipeline_mode = #tpu.pipeline_mode<synchronous>, transform_indices = @transform_2, window_bounds = array<i64: 1, 128>}, {pipeline_mode = #tpu.pipeline_mode<synchronous>, transform_indices = @transform_3, window_bounds = array<i64: 128, 128>}, {pipeline_mode = #tpu.pipeline_mode<synchronous>, transform_indices = @transform_4, window_bounds = array<i64: 1, 128>}, {transform_indices = @transform_5, window_bounds = array<i64: 128, 128>}, {transform_indices = @transform_6, window_bounds = array<i64: 1, 128>}, {transform_indices = @transform_7, window_bounds = array<i64: 8, 128>}]} {
    %c0 = arith.constant 0 : index
    %c0_0 = arith.constant 0 : index
    %0 = vector.load %arg2[%c0, %c0_0] : memref<8x5xi32, #tpu.memory_space<vmem>>, vector<8x5xi32>
    %1 = tpu.iota {dimensions = array<i32: 1>} : vector<8x128xi32>
    %2 = vector.extract_strided_slice %0 {offsets = [0, 0], sizes = [8, 1], strides = [1, 1]} : vector<8x5xi32> to vector<8x1xi32>
    %3 = vector.broadcast %2 : vector<8x1xi32> to vector<8x128xi32>
    %4 = arith.cmpi eq, %3, %1 : vector<8x128xi32>
    %5 = arith.extui %4 : vector<8x128xi1> to vector<8x128xi32>
    %6 = arith.sitofp %5 : vector<8x128xi32> to vector<8x128xf32>
    %7 = arith.truncf %6 : vector<8x128xf32> to vector<8x128xbf16>
    %8 = vector.extract_strided_slice %0 {offsets = [0, 1], sizes = [8, 1], strides = [1, 1]} : vector<8x5xi32> to vector<8x1xi32>
    %9 = vector.broadcast %8 : vector<8x1xi32> to vector<8x128xi32>
    %10 = arith.cmpi eq, %9, %1 : vector<8x128xi32>
    %11 = arith.extui %10 : vector<8x128xi1> to vector<8x128xi32>
    %12 = arith.sitofp %11 : vector<8x128xi32> to vector<8x128xf32>
    %13 = arith.truncf %12 : vector<8x128xf32> to vector<8x128xbf16>
    %14 = vector.extract_strided_slice %0 {offsets = [0, 2], sizes = [8, 1], strides = [1, 1]} : vector<8x5xi32> to vector<8x1xi32>
    %15 = vector.broadcast %14 : vector<8x1xi32> to vector<8x128xi32>
    %16 = arith.cmpi eq, %15, %1 : vector<8x128xi32>
    %17 = arith.extui %16 : vector<8x128xi1> to vector<8x128xi32>
    %18 = arith.sitofp %17 : vector<8x128xi32> to vector<8x128xf32>
    %19 = arith.truncf %18 : vector<8x128xf32> to vector<8x128xbf16>
    %20 = vector.extract_strided_slice %0 {offsets = [0, 3], sizes = [8, 1], strides = [1, 1]} : vector<8x5xi32> to vector<8x1xi32>
    %21 = vector.broadcast %20 : vector<8x1xi32> to vector<8x128xi32>
    %22 = arith.cmpi eq, %21, %1 : vector<8x128xi32>
    %23 = arith.extui %22 : vector<8x128xi1> to vector<8x128xi32>
    %24 = arith.sitofp %23 : vector<8x128xi32> to vector<8x128xf32>
    %25 = arith.truncf %24 : vector<8x128xf32> to vector<8x128xbf16>
    %26 = vector.extract_strided_slice %0 {offsets = [0, 4], sizes = [8, 1], strides = [1, 1]} : vector<8x5xi32> to vector<8x1xi32>
    %27 = vector.broadcast %26 : vector<8x1xi32> to vector<8x128xi32>
    %28 = arith.cmpi eq, %27, %1 : vector<8x128xi32>
    %29 = arith.extui %28 : vector<8x128xi1> to vector<8x128xi32>
    %30 = arith.sitofp %29 : vector<8x128xi32> to vector<8x128xf32>
    %31 = arith.truncf %30 : vector<8x128xf32> to vector<8x128xbf16>
    %32 = tpu.concatenate %7, %13, %19, %25, %31 in 1 : vector<8x128xbf16>, vector<8x128xbf16>, vector<8x128xbf16>, vector<8x128xbf16>, vector<8x128xbf16> -> vector<8x640xbf16>
    %c0_1 = arith.constant 0 : index
    %c0_2 = arith.constant 0 : index
    %33 = vector.load %arg3[%c0_1, %c0_2] : memref<640x128xbf16, #tpu.memory_space<vmem>>, vector<640x128xbf16>
    %cst = arith.constant dense<0.000000e+00> : vector<8x128xf32>
    %34 = tpu.matmul %32, %33, %cst {dimension_numbers = #tpu.dot_dimension_numbers<[1], [0], [0], [1], [0, 0, 1, 1], [], []>} : vector<8x640xbf16>, vector<640x128xbf16>, vector<8x128xf32> -> vector<8x128xf32>
    %c0_3 = arith.constant 0 : index
    %c0_4 = arith.constant 0 : index
    %35 = vector.load %arg4[%c0_3, %c0_4] : memref<1x128xf32, #tpu.memory_space<vmem>>, vector<1x128xf32>
    %36 = vector.broadcast %35 : vector<1x128xf32> to vector<8x128xf32>
    %37 = arith.addf %34, %36 : vector<8x128xf32>
    %cst_5 = arith.constant 0.000000e+00 : f32
    %38 = vector.broadcast %cst_5 : f32 to vector<8x128xf32>
    %39 = arith.maximumf %37, %38 : vector<8x128xf32>
    %40 = arith.truncf %39 : vector<8x128xf32> to vector<8x128xbf16>
    %c0_6 = arith.constant 0 : index
    %c0_7 = arith.constant 0 : index
    %41 = vector.load %arg5[%c0_6, %c0_7] : memref<128x128xbf16, #tpu.memory_space<vmem>>, vector<128x128xbf16>
    %cst_8 = arith.constant dense<0.000000e+00> : vector<8x128xf32>
    %42 = tpu.matmul %40, %41, %cst_8 {dimension_numbers = #tpu.dot_dimension_numbers<[1], [0], [0], [1], [0, 0, 1, 1], [], []>} : vector<8x128xbf16>, vector<128x128xbf16>, vector<8x128xf32> -> vector<8x128xf32>
    %c0_9 = arith.constant 0 : index
    %c0_10 = arith.constant 0 : index
    %43 = vector.load %arg6[%c0_9, %c0_10] : memref<1x128xf32, #tpu.memory_space<vmem>>, vector<1x128xf32>
    %44 = vector.broadcast %43 : vector<1x128xf32> to vector<8x128xf32>
    %45 = arith.addf %42, %44 : vector<8x128xf32>
    %cst_11 = arith.constant 0.000000e+00 : f32
    %46 = vector.broadcast %cst_11 : f32 to vector<8x128xf32>
    %47 = arith.maximumf %45, %46 : vector<8x128xf32>
    %48 = arith.truncf %47 : vector<8x128xf32> to vector<8x128xbf16>
    %c0_12 = arith.constant 0 : index
    %c0_13 = arith.constant 0 : index
    %49 = vector.load %arg7[%c0_12, %c0_13] : memref<128x128xbf16, #tpu.memory_space<vmem>>, vector<128x128xbf16>
    %cst_14 = arith.constant dense<0.000000e+00> : vector<8x128xf32>
    %50 = tpu.matmul %48, %49, %cst_14 {dimension_numbers = #tpu.dot_dimension_numbers<[1], [0], [0], [1], [0, 0, 1, 1], [], []>} : vector<8x128xbf16>, vector<128x128xbf16>, vector<8x128xf32> -> vector<8x128xf32>
    %c0_15 = arith.constant 0 : index
    %c0_16 = arith.constant 0 : index
    %51 = vector.load %arg8[%c0_15, %c0_16] : memref<1x128xf32, #tpu.memory_space<vmem>>, vector<1x128xf32>
    %52 = vector.broadcast %51 : vector<1x128xf32> to vector<8x128xf32>
    %53 = arith.addf %50, %52 : vector<8x128xf32>
    %c0_17 = arith.constant 0 : index
    %c0_18 = arith.constant 0 : index
    %54 = vector.load %arg9[%c0_17, %c0_18] : memref<8x128xf32, #tpu.memory_space<vmem>>, vector<8x128xf32>
    tpu.vector_store %arg9[%c0_17, %c0_18], %53 {strides = array<i32>} : memref<8x128xf32, #tpu.memory_space<vmem>>, vector<8x128xf32>,
    return
  }
  func.func @transform_0(%arg0: i32, %arg1: i32) -> (i32, i32) {
    %c0_i32 = arith.constant 0 : i32
    %c0_i32_0 = arith.constant 0 : i32
    return %arg1, %c0_i32 : i32, i32
  }
  func.func @transform_1(%arg0: i32, %arg1: i32) -> (i32, i32) {
    %c0_i32 = arith.constant 0 : i32
    %c0_i32_0 = arith.constant 0 : i32
    %c0_i32_1 = arith.constant 0 : i32
    return %c0_i32, %c0_i32_0 : i32, i32
  }
  func.func @transform_2(%arg0: i32, %arg1: i32) -> (i32, i32) {
    %c0_i32 = arith.constant 0 : i32
    %c0_i32_0 = arith.constant 0 : i32
    %c0_i32_1 = arith.constant 0 : i32
    return %c0_i32, %c0_i32_0 : i32, i32
  }
  func.func @transform_3(%arg0: i32, %arg1: i32) -> (i32, i32) {
    %c0_i32 = arith.constant 0 : i32
    %c0_i32_0 = arith.constant 0 : i32
    %c0_i32_1 = arith.constant 0 : i32
    return %c0_i32, %c0_i32_0 : i32, i32
  }
  func.func @transform_4(%arg0: i32, %arg1: i32) -> (i32, i32) {
    %c0_i32 = arith.constant 0 : i32
    %c0_i32_0 = arith.constant 0 : i32
    %c0_i32_1 = arith.constant 0 : i32
    return %c0_i32, %c0_i32_0 : i32, i32
  }
  func.func @transform_5(%arg0: i32, %arg1: i32) -> (i32, i32) {
    %c0_i32 = arith.constant 0 : i32
    %c0_i32_0 = arith.constant 0 : i32
    return %c0_i32, %arg0 : i32, i32
  }
  func.func @transform_6(%arg0: i32, %arg1: i32) -> (i32, i32) {
    %c0_i32 = arith.constant 0 : i32
    %c0_i32_0 = arith.constant 0 : i32
    return %c0_i32, %arg0 : i32, i32
  }
  func.func @transform_7(%arg0: i32, %arg1: i32) -> (i32, i32) {
    %c0_i32 = arith.constant 0 : i32
    return %arg1, %arg0 : i32, i32
  }
}

</mosaic_0001>

<llo_original>
// kernel: tpu_custom_call.1
$region0: #{tpu_custom_call.1}
  #allocation0 [shape = 'u32[]', space=smem, size = 0x4, offset = 0x4, fixed_abs, tag = 'smem constant byte address 0x4 - core index']
  #allocation1 [shape = 'u32[144,128]{1,0:T(1,128)}', space=vmem, size = 0x12000, scoped, tag = 'internal scratch']
  %s0 = inlined_call_operand.vmem [shape: s32[16,5], index: 0, kind: input, shape index: {}]
  %s1 = inlined_call_operand.hbm [shape: bf16[640,128], index: 1, kind: input, shape index: {}]
  %s2 = inlined_call_operand.vmem [shape: f32[1,128], index: 2, kind: input, shape index: {}]
  %s3 = inlined_call_operand.hbm [shape: bf16[128,128], index: 3, kind: input, shape index: {}]
  %s4 = inlined_call_operand.vmem [shape: f32[1,128], index: 4, kind: input, shape index: {}]
  %s5 = inlined_call_operand.hbm [shape: bf16[128,128], index: 5, kind: input, shape index: {}]
  %s6 = inlined_call_operand.vmem [shape: f32[1,128], index: 6, kind: input, shape index: {}]
  %s7 = inlined_call_operand.hbm [shape: f32[16,128], index: 7, kind: output, shape index: {}]
  %s8 = sld [smem:[#allocation0]]
  $region73: #{tpu_custom_call.1} parent=0
    _
  %s10 = ssub.s32 1, %s8
  %s11 = scalar_select 0, %s10, %s8
  $region1: #{tpu_custom_call.1} parent=0
    #allocation2 [shape = 'u8[163840]{0}', space=vmem, size = 0x28000, scoped, tag = 'input window, operand 1, single buffered']
    #allocation3 [shape = 's32[2]{0}', space=sflag, size = 0x8, scoped, tag = 'scoped memory for tpu_custom_call.1']
    #allocation4 [shape = 's32[2]{0}', space=sflag, size = 0x8, scoped, tag = 'scoped memory for tpu_custom_call.1']
    #allocation5 [shape = 'u8[32768]{0}', space=vmem, size = 0x8000, scoped, tag = 'input window, operand 3, single buffered']
    #allocation6 [shape = 's32[1]{0}', space=sflag, size = 0x4, scoped, tag = 'scoped memory for tpu_custom_call.1']
    #allocation7 [shape = 'u8[32768]{0}', space=vmem, size = 0x8000, scoped, tag = 'input window, operand 5, single buffered']
    #allocation8 [shape = 'u8[8192]{0}', space=vmem, size = 0x2000, scoped, tag = 'output window, operand 0']
    %12 = vsyncpa [#allocation3], 0
    %13 = vsyncpa [#allocation6], 0
    %14 = vsyncpa [#allocation4], 0
    %s15 = scalar_lea.sflag [#allocation4], 1
    %16 = vsyncpa %s15, 0
    loop: start=0, step=1, limit=4
    $region2: #{tpu_custom_call.1} parent=1 // loop_pre_header
      _
    $region3: #{tpu_custom_call.1} parent=1 // loop_header
      %s18 = sphi 0, %s22
      %p19 = scmp.ge.s32.totalorder %s18, 4
      %s25 = sphi 0, %s37
      %s26 = sphi 0, %s33
      %s27 = sphi 0, %s25
      %s28 = sphi 0, %s26
      %s29 = sphi 0, %s27
      %s30 = sphi 0, %s28
      %s40 = sphi 0, %s42
      %s43 = sphi 0, %s40
      %s44 = sphi 0, %s43
      %s60 = sphi 0, %s44
      %s64 = sphi 0, %s64
      %s66 = sphi 0, %s64
      %s67 = sphi 0, %s66
      %s81 = sphi 0, %s67
      %s85 = sphi 0, %s85
      %s87 = sphi 0, %s85
      %s88 = sphi 0, %s87
      %s102 = sphi 0, %s88
      %s106 = sphi 0, %s106
      %s108 = sphi 0, %s106
      %s109 = sphi 0, %s108
      %s123 = sphi 0, %s109
      %s127 = sphi 0, %s127
      %s129 = sphi 0, %s127
      %s130 = sphi 0, %s129
      %s144 = sphi 0, %s130
      %s150 = sphi 0, %s152
      %s153 = sphi 0, %s150
      %s154 = sphi 0, %s153
      %s170 = sphi 0, %s154
      %s176 = sphi 0, %s178
      %s179 = sphi 0, %s176
      %s180 = sphi 0, %s179
      %s196 = sphi 0, %s180
      %s204 = sphi 0, %s206
      %s207 = sphi 0, %s204
      %s208 = sphi 0, %s207
      %s224 = sphi 0, %s208
    $region4: #{tpu_custom_call.1} parent=1 // loop_header_branch
      %21 = sbr.rel (%p19) target = $region8
    $region5: #{tpu_custom_call.1} parent=1 // loop_body
      %s23 = ssub.s32 %s18, 1
      %s24 = ssub.s32 %s18, 2
      %s31 = sadd.s32 1, %s26
      %p32 = scmp.ge.s32.totalorder %s31, 2
      %s33 = scalar_select %p32, 0, %s31
      %s34 = sadd.s32 1, %s25
      %s35 = scalar_select %p32, %s34, %s25
      %p36 = scmp.ge.s32.totalorder %s35, 1
      %s37 = scalar_select %p36, 0, %s35
      %s38 = ssub.s32 %s26, %s33
      %p39 = scmp.eq.s32.totalorder %s38, 0
      %s41 = sadd.s32 %s40, 1
      %s42 = scalar_select %p39, %s40, %s41
      %p45 = pneg %p39
      %p46 = scmp.eq.s32.totalorder %s18, 1
      %p47 = por %p45, %p46
      %p48 = scmp.ne.s32.totalorder %s40, %s43
      %p49 = scmp.eq.s32.totalorder %s18, 0
      %p50 = por %p48, %p49
      %p51 = scmp.ne.s32.totalorder %s40, %s43
      %p52 = scmp.eq.s32.totalorder %s23, 1
      %p53 = por %p51, %p52
      %p54 = scmp.ne.s32.totalorder %s43, %s44
      %p55 = scmp.eq.s32.totalorder %s23, 0
      %p56 = por %p54, %p55
      %p57 = scmp.ne.s32.totalorder %s43, %s44
      %p58 = scmp.eq.s32.totalorder %s24, 1
      %p59 = por %p57, %p58
      %p61 = scmp.ne.s32.totalorder %s44, %s60
      %p62 = scmp.eq.s32.totalorder %s24, 0
      %p63 = por %p61, %p62
      %s65 = sadd.s32 %s64, 1
      %p68 = scmp.eq.s32.totalorder %s18, 1
      %p69 = scmp.ne.s32.totalorder %s64, %s66
      %p70 = scmp.eq.s32.totalorder %s18, 0
      %p71 = por %p69, %p70
      %p72 = scmp.ne.s32.totalorder %s64, %s66
      %p73 = scmp.eq.s32.totalorder %s23, 1
      %p74 = por %p72, %p73
      %p75 = scmp.ne.s32.totalorder %s66, %s67
      %p76 = scmp.eq.s32.totalorder %s23, 0
      %p77 = por %p75, %p76
      %p78 = scmp.ne.s32.totalorder %s66, %s67
      %p79 = scmp.eq.s32.totalorder %s24, 1
      %p80 = por %p78, %p79
      %p82 = scmp.ne.s32.totalorder %s67, %s81
      %p83 = scmp.eq.s32.totalorder %s24, 0
      %p84 = por %p82, %p83
      %s86 = sadd.s32 %s85, 1
      %p89 = scmp.eq.s32.totalorder %s18, 1
      %p90 = scmp.ne.s32.totalorder %s85, %s87
      %p91 = scmp.eq.s32.totalorder %s18, 0
      %p92 = por %p90, %p91
      %p93 = scmp.ne.s32.totalorder %s85, %s87
      %p94 = scmp.eq.s32.totalorder %s23, 1
      %p95 = por %p93, %p94
      %p96 = scmp.ne.s32.totalorder %s87, %s88
      %p97 = scmp.eq.s32.totalorder %s23, 0
      %p98 = por %p96, %p97
      %p99 = scmp.ne.s32.totalorder %s87, %s88
      %p100 = scmp.eq.s32.totalorder %s24, 1
      %p101 = por %p99, %p100
      %p103 = scmp.ne.s32.totalorder %s88, %s102
      %p104 = scmp.eq.s32.totalorder %s24, 0
      %p105 = por %p103, %p104
      %s107 = sadd.s32 %s106, 1
      %p110 = scmp.eq.s32.totalorder %s18, 1
      %p111 = scmp.ne.s32.totalorder %s106, %s108
      %p112 = scmp.eq.s32.totalorder %s18, 0
      %p113 = por %p111, %p112
      %p114 = scmp.ne.s32.totalorder %s106, %s108
      %p115 = scmp.eq.s32.totalorder %s23, 1
      %p116 = por %p114, %p115
      %p117 = scmp.ne.s32.totalorder %s108, %s109
      %p118 = scmp.eq.s32.totalorder %s23, 0
      %p119 = por %p117, %p118
      %p120 = scmp.ne.s32.totalorder %s108, %s109
      %p121 = scmp.eq.s32.totalorder %s24, 1
      %p122 = por %p120, %p121
      %p124 = scmp.ne.s32.totalorder %s109, %s123
      %p125 = scmp.eq.s32.totalorder %s24, 0
      %p126 = por %p124, %p125
      %s128 = sadd.s32 %s127, 1
      %p131 = scmp.eq.s32.totalorder %s18, 1
      %p132 = scmp.ne.s32.totalorder %s127, %s129
      %p133 = scmp.eq.s32.totalorder %s18, 0
      %p134 = por %p132, %p133
      %p135 = scmp.ne.s32.totalorder %s127, %s129
      %p136 = scmp.eq.s32.totalorder %s23, 1
      %p137 = por %p135, %p136
      %p138 = scmp.ne.s32.totalorder %s129, %s130
      %p139 = scmp.eq.s32.totalorder %s23, 0
      %p140 = por %p138, %p139
      %p141 = scmp.ne.s32.totalorder %s129, %s130
      %p142 = scmp.eq.s32.totalorder %s24, 1
      %p143 = por %p141, %p142
      %p145 = scmp.ne.s32.totalorder %s130, %s144
      %p146 = scmp.eq.s32.totalorder %s24, 0
      %p147 = por %p145, %p146
      %s148 = ssub.s32 %s25, %s37
      %p149 = scmp.eq.s32.totalorder %s148, 0
      %s151 = sadd.s32 %s150, 1
      %s152 = scalar_select %p149, %s150, %s151
      %p155 = pneg %p149
      %p156 = scmp.eq.s32.totalorder %s18, 1
      %p157 = por %p155, %p156
      %p158 = scmp.ne.s32.totalorder %s150, %s153
      %p159 = scmp.eq.s32.totalorder %s18, 0
      %p160 = por %p158, %p159
      %p161 = scmp.ne.s32.totalorder %s150, %s153
      %p162 = scmp.eq.s32.totalorder %s23, 1
      %p163 = por %p161, %p162
      %p164 = scmp.ne.s32.totalorder %s153, %s154
      %p165 = scmp.eq.s32.totalorder %s23, 0
      %p166 = por %p164, %p165
      %p167 = scmp.ne.s32.totalorder %s153, %s154
      %p168 = scmp.eq.s32.totalorder %s24, 1
      %p169 = por %p167, %p168
      %p171 = scmp.ne.s32.totalorder %s154, %s170
      %p172 = scmp.eq.s32.totalorder %s24, 0
      %p173 = por %p171, %p172
      %s174 = ssub.s32 %s25, %s37
      %p175 = scmp.eq.s32.totalorder %s174, 0
      %s177 = sadd.s32 %s176, 1
      %s178 = scalar_select %p175, %s176, %s177
      %p181 = pneg %p175
      %p182 = scmp.eq.s32.totalorder %s18, 1
      %p183 = por %p181, %p182
      %p184 = scmp.ne.s32.totalorder %s176, %s179
      %p185 = scmp.eq.s32.totalorder %s18, 0
      %p186 = por %p184, %p185
      %p187 = scmp.ne.s32.totalorder %s176, %s179
      %p188 = scmp.eq.s32.totalorder %s23, 1
      %p189 = por %p187, %p188
      %p190 = scmp.ne.s32.totalorder %s179, %s180
      %p191 = scmp.eq.s32.totalorder %s23, 0
      %p192 = por %p190, %p191
      %p193 = scmp.ne.s32.totalorder %s179, %s180
      %p194 = scmp.eq.s32.totalorder %s24, 1
      %p195 = por %p193, %p194
      %p197 = scmp.ne.s32.totalorder %s180, %s196
      %p198 = scmp.eq.s32.totalorder %s24, 0
      %p199 = por %p197, %p198
      %s200 = ssub.s32 %s26, %s33
      %s201 = ssub.s32 %s25, %s37
      %s202 = sor.u32 %s200, %s201
      %p203 = scmp.eq.s32.totalorder %s202, 0
      %s205 = sadd.s32 %s204, 1
      %s206 = scalar_select %p203, %s204, %s205
      %p209 = pneg %p203
      %p210 = scmp.eq.s32.totalorder %s18, 1
      %p211 = por %p209, %p210
      %p212 = scmp.ne.s32.totalorder %s204, %s207
      %p213 = scmp.eq.s32.totalorder %s18, 0
      %p214 = por %p212, %p213
      %p215 = scmp.ne.s32.totalorder %s204, %s207
      %p216 = scmp.eq.s32.totalorder %s23, 1
      %p217 = por %p215, %p216
      %p218 = scmp.ne.s32.totalorder %s207, %s208
      %p219 = scmp.eq.s32.totalorder %s23, 0
      %p220 = por %p218, %p219
      %p221 = scmp.ne.s32.totalorder %s207, %s208
      %p222 = scmp.eq.s32.totalorder %s24, 1
      %p223 = por %p221, %p222
      %p225 = scmp.ne.s32.totalorder %s208, %s224
      %p226 = scmp.eq.s32.totalorder %s24, 0
      %p227 = por %p225, %p226
      %p228 = scmp.le.s32.totalorder 1, %s18
      %p229 = scmp.lt.s32.totalorder %s18, 3
      %p230 = pnand %p228, %p229
      %p231 = pneg %p230
      // Predicated region
      $region9: #{tpu_custom_call.1} parent=5 // pred_check
        _
      $region10: #{tpu_custom_call.1} parent=5 // pred_check_branch
        %233 = sbr.rel (%p230) target = $region12
      $region11: #{tpu_custom_call.1} parent=5 // pred_region
        %s234 = ssub.s32 %s18, 1
        // Predicated region
        $region13: #{tpu_custom_call.1} parent=11 // pred_check
          %p235 = pneg %p77
        $region14: #{tpu_custom_call.1} parent=11 // pred_check_branch
          %237 = sbr.rel (%p235) target = $region16
        $region15: #{tpu_custom_call.1} parent=11 // pred_region
          %s239 = ssub.s32 5120, 5120
          %240 = vsyncadd [#allocation3], %s239
          %s241 = sshll.u32 [#allocation2], 4
          %s242 = int_to_ptr.vmem [resolvable:$true] %s241
          %247 = dma.hbm_to_vmem [thread:$0]  %s1, 5120, %s242, [#allocation3], 64, 64, 4
        $region16: #{tpu_custom_call.1} parent=11 // pred_fallthru
          _
        // Predicated region
        $region17: #{tpu_custom_call.1} parent=11 // pred_check
          %p248 = pneg %p98
        $region18: #{tpu_custom_call.1} parent=11 // pred_check_branch
          %250 = sbr.rel (%p248) target = $region20
        $region19: #{tpu_custom_call.1} parent=11 // pred_region
          _
        $region20: #{tpu_custom_call.1} parent=11 // pred_fallthru
          _
        // Predicated region
        $region21: #{tpu_custom_call.1} parent=11 // pred_check
          %p251 = pneg %p119
        $region22: #{tpu_custom_call.1} parent=11 // pred_check_branch
          %253 = sbr.rel (%p251) target = $region24
        $region23: #{tpu_custom_call.1} parent=11 // pred_region
          %s255 = ssub.s32 1024, 1024
          %256 = vsyncadd [#allocation6], %s255
          %s257 = sshll.u32 [#allocation5], 4
          %s258 = int_to_ptr.vmem [resolvable:$true] %s257
          %263 = dma.hbm_to_vmem [thread:$0]  %s3, 1024, %s258, [#allocation6], 64, 64, 4
        $region24: #{tpu_custom_call.1} parent=11 // pred_fallthru
          _
        // Predicated region
        $region25: #{tpu_custom_call.1} parent=11 // pred_check
          %p264 = pneg %p140
        $region26: #{tpu_custom_call.1} parent=11 // pred_check_branch
          %266 = sbr.rel (%p264) target = $region28
        $region27: #{tpu_custom_call.1} parent=11 // pred_region
          _
        $region28: #{tpu_custom_call.1} parent=11 // pred_fallthru
          _
        // Predicated region
        $region29: #{tpu_custom_call.1} parent=11 // pred_check
          %p267 = pneg %p166
        $region30: #{tpu_custom_call.1} parent=11 // pred_check_branch
          %269 = sbr.rel (%p267) target = $region32
        $region31: #{tpu_custom_call.1} parent=11 // pred_region
          %s271 = ssub.s32 1024, 1024
          %272 = vsyncadd [#allocation6], %s271
          %s273 = smul.addr %s27, 64
          %s274 = scalar_lea.hbm %s5, %s273
          %s275 = sshll.u32 [#allocation7], 4
          %s276 = int_to_ptr.vmem [resolvable:$true] %s275
          %281 = dma.hbm_to_vmem [thread:$0]  %s274, 1024, %s276, [#allocation6], 64, 64, 4
        $region32: #{tpu_custom_call.1} parent=11 // pred_fallthru
          _
        // Predicated region
        $region33: #{tpu_custom_call.1} parent=11 // pred_check
          %p282 = pneg %p192
        $region34: #{tpu_custom_call.1} parent=11 // pred_check_branch
          %284 = sbr.rel (%p282) target = $region36
        $region35: #{tpu_custom_call.1} parent=11 // pred_region
          %p285 = scmp.lt.s32.totalorder %s27, 0
          %s286 = scalar_select %p285, %s27, 0
          %s287 = scalar_lea.vmem %s6, %s286
        $region36: #{tpu_custom_call.1} parent=11 // pred_fallthru
          _
      $region12: #{tpu_custom_call.1} parent=5 // pred_fallthru
        _
      %p288 = scmp.lt.s32.totalorder %s18, 2
      // Predicated region
      $region37: #{tpu_custom_call.1} parent=5 // pred_check
        %p289 = pneg %p288
      $region38: #{tpu_custom_call.1} parent=5 // pred_check_branch
        %291 = sbr.rel (%p289) target = $region40
      $region39: #{tpu_custom_call.1} parent=5 // pred_region
        // Predicated region
        $region41: #{tpu_custom_call.1} parent=39 // pred_check
          %p292 = pneg %p50
        $region42: #{tpu_custom_call.1} parent=39 // pred_check_branch
          %294 = sbr.rel (%p292) target = $region44
        $region43: #{tpu_custom_call.1} parent=39 // pred_region
          %p295 = scmp.lt.s32.totalorder %s26, 1
          %s296 = scalar_select %p295, %s26, 1
          %s297 = smul.addr %s296, 8
          %s298 = scalar_lea.vmem %s0, %s297
        $region44: #{tpu_custom_call.1} parent=39 // pred_fallthru
          _
      $region40: #{tpu_custom_call.1} parent=5 // pred_fallthru
        _
      %p299 = scmp.le.s32.totalorder 1, %s18
      %p300 = scmp.lt.s32.totalorder %s18, 3
      %p301 = pnand %p299, %p300
      %p302 = pneg %p301
      // Predicated region
      $region45: #{tpu_custom_call.1} parent=5 // pred_check
        _
      $region46: #{tpu_custom_call.1} parent=5 // pred_check_branch
        %304 = sbr.rel (%p301) target = $region48
      $region47: #{tpu_custom_call.1} parent=5 // pred_region
        %s305 = ssub.s32 %s18, 1
        // Predicated region
        $region49: #{tpu_custom_call.1} parent=47 // pred_check
          %p306 = pneg %p77
        $region50: #{tpu_custom_call.1} parent=47 // pred_check_branch
          %308 = sbr.rel (%p306) target = $region52
        $region51: #{tpu_custom_call.1} parent=47 // pred_region
          %309 = dma.done [#allocation3], 5120
        $region52: #{tpu_custom_call.1} parent=47 // pred_fallthru
          _
        // Predicated region
        $region53: #{tpu_custom_call.1} parent=47 // pred_check
          %p310 = pneg %p119
        $region54: #{tpu_custom_call.1} parent=47 // pred_check_branch
          %312 = sbr.rel (%p310) target = $region56
        $region55: #{tpu_custom_call.1} parent=47 // pred_region
          %313 = dma.done [#allocation6], 1024
        $region56: #{tpu_custom_call.1} parent=47 // pred_fallthru
          _
        // Predicated region
        $region57: #{tpu_custom_call.1} parent=47 // pred_check
          %p314 = pneg %p166
        $region58: #{tpu_custom_call.1} parent=47 // pred_check_branch
          %316 = sbr.rel (%p314) target = $region60
        $region59: #{tpu_custom_call.1} parent=47 // pred_region
          %317 = dma.done [#allocation6], 1024
        $region60: #{tpu_custom_call.1} parent=47 // pred_fallthru
          _
        %p318 = scmp.lt.s32.totalorder %s28, 1
        %s319 = scalar_select %p318, %s28, 1
        %s320 = smul.addr %s319, 8
        %s321 = scalar_lea.vmem %s0, %s320
        %p322 = pneg %p56
        %p323 = pneg %p53
        %p324 = pneg %p77
        %p325 = pneg %p74
        %p326 = pneg %p98
        %p327 = pneg %p95
        %p328 = pneg %p119
        %p329 = pneg %p116
        %p330 = pneg %p140
        %p331 = pneg %p137
        %p332 = pneg %p166
        %p333 = pneg %p163
        %p334 = scmp.lt.s32.totalorder %s27, 0
        %s335 = scalar_select %p334, %s27, 0
        %s336 = scalar_lea.vmem %s6, %s335
        %p337 = pneg %p192
        %p338 = pneg %p189
        %p339 = pneg %p220
        %p340 = pneg %p217
        %s341 = sand.u32 %s207, 1
        %s342 = scalar_lea.sflag [#allocation4], %s341
        %s343 = sand.u32 %s207, 1
        %s344 = smul.addr %s343, 8
        %s345 = scalar_lea.vmem [#allocation8], %s344
        %p346 = scmp.lt.s32.totalorder %s28, 1
        %s347 = scalar_select %p346, %s28, 1
        %s348 = smul.addr %s347, 8
        %s349 = scalar_lea.vmem %s0, %s348
        %p350 = scmp.lt.s32.totalorder %s27, 0
        %s351 = scalar_select %p350, %s27, 0
        %s352 = scalar_lea.vmem %s6, %s351
        %v354 = vld [vmem:[%s349] sm:$0xff]
        %v355 = vlaneseq
        %v356 = vand.u32 %v355, 127
        %357 = vset.pattern.permute.xlu0 0
        %358 = vperm.xlu0 %357, %v354
        %v359 = vpop.permute.xlu0 %358
        %vm360 = vcmp.eq.s32.totalorder %v359, %v356
        %v361 = vsel %vm360, 1, 0
        %v362 = vcvt.s32.f32 %v361
        %v363 = vpack.c.bf16 %v362, %v362
        %364 = vset.pattern.permute.xlu0 1
        %365 = vperm.xlu0 %364, %v354
        %v366 = vpop.permute.xlu0 %365
        %vm367 = vcmp.eq.s32.totalorder %v366, %v356
        %v368 = vsel %vm367, 1, 0
        %v369 = vcvt.s32.f32 %v368
        %v370 = vpack.c.bf16 %v369, %v369
        %371 = vset.pattern.permute.xlu0 2
        %372 = vperm.xlu0 %371, %v354
        %v373 = vpop.permute.xlu0 %372
        %vm374 = vcmp.eq.s32.totalorder %v373, %v356
        %v375 = vsel %vm374, 1, 0
        %v376 = vcvt.s32.f32 %v375
        %v377 = vpack.c.bf16 %v376, %v376
        %378 = vset.pattern.permute.xlu0 3
        %379 = vperm.xlu0 %378, %v354
        %v380 = vpop.permute.xlu0 %379
        %vm381 = vcmp.eq.s32.totalorder %v380, %v356
        %v382 = vsel %vm381, 1, 0
        %v383 = vcvt.s32.f32 %v382
        %v384 = vpack.c.bf16 %v383, %v383
        %385 = vset.pattern.permute.xlu0 4
        %386 = vperm.xlu0 %385, %v354
        %v387 = vpop.permute.xlu0 %386
        %vm388 = vcmp.eq.s32.totalorder %v387, %v356
        %v389 = vsel %vm388, 1, 0
        %v390 = vcvt.s32.f32 %v389
        %v391 = vpack.c.bf16 %v390, %v390
        %v392 = vld [vmem:[#allocation2] sm:$0xf]
        %v393 = vld [vmem:[#allocation2 + $0x4] sm:$0xf]
        %v394 = vld [vmem:[#allocation2 + $0x8] sm:$0xf]
        %v395 = vld [vmem:[#allocation2 + $0xc] sm:$0xf]
        %v396 = vld [vmem:[#allocation2 + $0x10] sm:$0xf]
        %v397 = vld [vmem:[#allocation2 + $0x14] sm:$0xf]
        %v398 = vld [vmem:[#allocation2 + $0x18] sm:$0xf]
        %v399 = vld [vmem:[#allocation2 + $0x1c] sm:$0xf]
        %v400 = vld [vmem:[#allocation2 + $0x20] sm:$0xf]
        %v401 = vld [vmem:[#allocation2 + $0x24] sm:$0xf]
        %v402 = vld [vmem:[#allocation2 + $0x28] sm:$0xf]
        %v403 = vld [vmem:[#allocation2 + $0x2c] sm:$0xf]
        %v404 = vld [vmem:[#allocation2 + $0x30] sm:$0xf]
        %v405 = vld [vmem:[#allocation2 + $0x34] sm:$0xf]
        %v406 = vld [vmem:[#allocation2 + $0x38] sm:$0xf]
        %v407 = vld [vmem:[#allocation2 + $0x3c] sm:$0xf]
        %v408 = vld [vmem:[#allocation2 + $0x40] sm:$0xf]
        %v409 = vld [vmem:[#allocation2 + $0x44] sm:$0xf]
        %v410 = vld [vmem:[#allocation2 + $0x48] sm:$0xf]
        %v411 = vld [vmem:[#allocation2 + $0x4c] sm:$0xf]
        %v412 = vld [vmem:[#allocation2 + $0x50] sm:$0xf]
        %v413 = vld [vmem:[#allocation2 + $0x54] sm:$0xf]
        %v414 = vld [vmem:[#allocation2 + $0x58] sm:$0xf]
        %v415 = vld [vmem:[#allocation2 + $0x5c] sm:$0xf]
        %v416 = vld [vmem:[#allocation2 + $0x60] sm:$0xf]
        %v417 = vld [vmem:[#allocation2 + $0x64] sm:$0xf]
        %v418 = vld [vmem:[#allocation2 + $0x68] sm:$0xf]
        %v419 = vld [vmem:[#allocation2 + $0x6c] sm:$0xf]
        %v420 = vld [vmem:[#allocation2 + $0x70] sm:$0xf]
        %v421 = vld [vmem:[#allocation2 + $0x74] sm:$0xf]
        %v422 = vld [vmem:[#allocation2 + $0x78] sm:$0xf]
        %v423 = vld [vmem:[#allocation2 + $0x7c] sm:$0xf]
        %v424 = vld [vmem:[#allocation2 + $0x80] sm:$0xf]
        %v425 = vld [vmem:[#allocation2 + $0x84] sm:$0xf]
        %v426 = vld [vmem:[#allocation2 + $0x88] sm:$0xf]
        %v427 = vld [vmem:[#allocation2 + $0x8c] sm:$0xf]
        %v428 = vld [vmem:[#allocation2 + $0x90] sm:$0xf]
        %v429 = vld [vmem:[#allocation2 + $0x94] sm:$0xf]
        %v430 = vld [vmem:[#allocation2 + $0x98] sm:$0xf]
        %v431 = vld [vmem:[#allocation2 + $0x9c] sm:$0xf]
        %v432 = vld [vmem:[#allocation2 + $0xa0] sm:$0xf]
        %v433 = vld [vmem:[#allocation2 + $0xa4] sm:$0xf]
        %v434 = vld [vmem:[#allocation2 + $0xa8] sm:$0xf]
        %v435 = vld [vmem:[#allocation2 + $0xac] sm:$0xf]
        %v436 = vld [vmem:[#allocation2 + $0xb0] sm:$0xf]
        %v437 = vld [vmem:[#allocation2 + $0xb4] sm:$0xf]
        %v438 = vld [vmem:[#allocation2 + $0xb8] sm:$0xf]
        %v439 = vld [vmem:[#allocation2 + $0xbc] sm:$0xf]
        %v440 = vld [vmem:[#allocation2 + $0xc0] sm:$0xf]
        %v441 = vld [vmem:[#allocation2 + $0xc4] sm:$0xf]
        %v442 = vld [vmem:[#allocation2 + $0xc8] sm:$0xf]
        %v443 = vld [vmem:[#allocation2 + $0xcc] sm:$0xf]
        %v444 = vld [vmem:[#allocation2 + $0xd0] sm:$0xf]
        %v445 = vld [vmem:[#allocation2 + $0xd4] sm:$0xf]
        %v446 = vld [vmem:[#allocation2 + $0xd8] sm:$0xf]
        %v447 = vld [vmem:[#allocation2 + $0xdc] sm:$0xf]
        %v448 = vld [vmem:[#allocation2 + $0xe0] sm:$0xf]
        %v449 = vld [vmem:[#allocation2 + $0xe4] sm:$0xf]
        %v450 = vld [vmem:[#allocation2 + $0xe8] sm:$0xf]
        %v451 = vld [vmem:[#allocation2 + $0xec] sm:$0xf]
        %v452 = vld [vmem:[#allocation2 + $0xf0] sm:$0xf]
        %v453 = vld [vmem:[#allocation2 + $0xf4] sm:$0xf]
        %v454 = vld [vmem:[#allocation2 + $0xf8] sm:$0xf]
        %v455 = vld [vmem:[#allocation2 + $0xfc] sm:$0xf]
        %v456 = vld [vmem:[#allocation2 + $0x100] sm:$0xf]
        %v457 = vld [vmem:[#allocation2 + $0x104] sm:$0xf]
        %v458 = vld [vmem:[#allocation2 + $0x108] sm:$0xf]
        %v459 = vld [vmem:[#allocation2 + $0x10c] sm:$0xf]
        %v460 = vld [vmem:[#allocation2 + $0x110] sm:$0xf]
        %v461 = vld [vmem:[#allocation2 + $0x114] sm:$0xf]
        %v462 = vld [vmem:[#allocation2 + $0x118] sm:$0xf]
        %v463 = vld [vmem:[#allocation2 + $0x11c] sm:$0xf]
        %v464 = vld [vmem:[#allocation2 + $0x120] sm:$0xf]
        %v465 = vld [vmem:[#allocation2 + $0x124] sm:$0xf]
        %v466 = vld [vmem:[#allocation2 + $0x128] sm:$0xf]
        %v467 = vld [vmem:[#allocation2 + $0x12c] sm:$0xf]
        %v468 = vld [vmem:[#allocation2 + $0x130] sm:$0xf]
        %v469 = vld [vmem:[#allocation2 + $0x134] sm:$0xf]
        %v470 = vld [vmem:[#allocation2 + $0x138] sm:$0xf]
        %v471 = vld [vmem:[#allocation2 + $0x13c] sm:$0xf]
        %v472 = vld [vmem:[%s2] sm:$0x1]
        %v474 = vlaneseq
        %v475 = vshrl.u32 %v474, 7
        %v476 = vsub.s32 0, %v475
        %v477 = vrot.slane %v472, %v476
        %v559 = vunpack.c.l.b16 %v392
        %v560 = vunpack.c.l.b16 %v393
        %v561 = vunpack.c.l.b16 %v394
        %v562 = vunpack.c.l.b16 %v395
        %v563 = vunpack.c.l.b16 %v396
        %v564 = vunpack.c.l.b16 %v397
        %v565 = vunpack.c.l.b16 %v398
        %v566 = vunpack.c.l.b16 %v399
        %v567 = vunpack.c.l.b16 %v400
        %v568 = vunpack.c.l.b16 %v401
        %v569 = vunpack.c.l.b16 %v402
        %v570 = vunpack.c.l.b16 %v403
        %v571 = vunpack.c.l.b16 %v404
        %v572 = vunpack.c.l.b16 %v405
        %v573 = vunpack.c.l.b16 %v406
        %v574 = vunpack.c.l.b16 %v407
        %v575 = vunpack.c.l.b16 %v408
        %v576 = vunpack.c.l.b16 %v409
        %v577 = vunpack.c.l.b16 %v410
        %v578 = vunpack.c.l.b16 %v411
        %v579 = vunpack.c.l.b16 %v412
        %v580 = vunpack.c.l.b16 %v413
        %v581 = vunpack.c.l.b16 %v414
        %v582 = vunpack.c.l.b16 %v415
        %v583 = vunpack.c.l.b16 %v416
        %v584 = vunpack.c.l.b16 %v417
        %v585 = vunpack.c.l.b16 %v418
        %v586 = vunpack.c.l.b16 %v419
        %v587 = vunpack.c.l.b16 %v420
        %v588 = vunpack.c.l.b16 %v421
        %v589 = vunpack.c.l.b16 %v422
        %v590 = vunpack.c.l.b16 %v423
        %v591 = vunpack.c.l.b16 %v424
        %v592 = vunpack.c.l.b16 %v425
        %v593 = vunpack.c.l.b16 %v426
        %v594 = vunpack.c.l.b16 %v427
        %v595 = vunpack.c.l.b16 %v428
        %v596 = vunpack.c.l.b16 %v429
        %v597 = vunpack.c.l.b16 %v430
        %v598 = vunpack.c.l.b16 %v431
        %v599 = vunpack.c.l.b16 %v432
        %v600 = vunpack.c.l.b16 %v433
        %v601 = vunpack.c.l.b16 %v434
        %v602 = vunpack.c.l.b16 %v435
        %v603 = vunpack.c.l.b16 %v436
        %v604 = vunpack.c.l.b16 %v437
        %v605 = vunpack.c.l.b16 %v438
        %v606 = vunpack.c.l.b16 %v439
        %v607 = vunpack.c.l.b16 %v440
        %v608 = vunpack.c.l.b16 %v441
        %v609 = vunpack.c.l.b16 %v442
        %v610 = vunpack.c.l.b16 %v443
        %v611 = vunpack.c.l.b16 %v444
        %v612 = vunpack.c.l.b16 %v445
        %v613 = vunpack.c.l.b16 %v446
        %v614 = vunpack.c.l.b16 %v447
        %v615 = vunpack.c.l.b16 %v448
        %v616 = vunpack.c.l.b16 %v449
        %v617 = vunpack.c.l.b16 %v450
        %v618 = vunpack.c.l.b16 %v451
        %v619 = vunpack.c.l.b16 %v452
        %v620 = vunpack.c.l.b16 %v453
        %v621 = vunpack.c.l.b16 %v454
        %v622 = vunpack.c.l.b16 %v455
        %v623 = vunpack.c.l.b16 %v456
        %v624 = vunpack.c.l.b16 %v457
        %v625 = vunpack.c.l.b16 %v458
        %v626 = vunpack.c.l.b16 %v459
        %v627 = vunpack.c.l.b16 %v460
        %v628 = vunpack.c.l.b16 %v461
        %v629 = vunpack.c.l.b16 %v462
        %v630 = vunpack.c.l.b16 %v463
        %v631 = vunpack.c.l.b16 %v464
        %v632 = vunpack.c.l.b16 %v465
        %v633 = vunpack.c.l.b16 %v466
        %v634 = vunpack.c.l.b16 %v467
        %v635 = vunpack.c.l.b16 %v468
        %v636 = vunpack.c.l.b16 %v469
        %v637 = vunpack.c.l.b16 %v470
        %v638 = vunpack.c.l.b16 %v471
        %v639 = vpack.c.b16 %v560, %v559
        %v640 = vpack.c.b16 %v562, %v561
        %v641 = vpack.c.b16 %v564, %v563
        %v642 = vpack.c.b16 %v566, %v565
        %v643 = vpack.c.b16 %v568, %v567
        %v644 = vpack.c.b16 %v570, %v569
        %v645 = vpack.c.b16 %v572, %v571
        %v646 = vpack.c.b16 %v574, %v573
        %v647 = vpack.c.b16 %v576, %v575
        %v648 = vpack.c.b16 %v578, %v577
        %v649 = vpack.c.b16 %v580, %v579
        %v650 = vpack.c.b16 %v582, %v581
        %v651 = vpack.c.b16 %v584, %v583
        %v652 = vpack.c.b16 %v586, %v585
        %v653 = vpack.c.b16 %v588, %v587
        %v654 = vpack.c.b16 %v590, %v589
        %v655 = vpack.c.b16 %v592, %v591
        %v656 = vpack.c.b16 %v594, %v593
        %v657 = vpack.c.b16 %v596, %v595
        %v658 = vpack.c.b16 %v598, %v597
        %v659 = vpack.c.b16 %v600, %v599
        %v660 = vpack.c.b16 %v602, %v601
        %v661 = vpack.c.b16 %v604, %v603
        %v662 = vpack.c.b16 %v606, %v605
        %v663 = vpack.c.b16 %v608, %v607
        %v664 = vpack.c.b16 %v610, %v609
        %v665 = vpack.c.b16 %v612, %v611
        %v666 = vpack.c.b16 %v614, %v613
        %v667 = vpack.c.b16 %v616, %v615
        %v668 = vpack.c.b16 %v618, %v617
        %v669 = vpack.c.b16 %v620, %v619
        %v670 = vpack.c.b16 %v622, %v621
        %v671 = vpack.c.b16 %v624, %v623
        %v672 = vpack.c.b16 %v626, %v625
        %v673 = vpack.c.b16 %v628, %v627
        %v674 = vpack.c.b16 %v630, %v629
        %v675 = vpack.c.b16 %v632, %v631
        %v676 = vpack.c.b16 %v634, %v633
        %v677 = vpack.c.b16 %v636, %v635
        %v678 = vpack.c.b16 %v638, %v637
        %719 = vmatprep.subr.bf16.mxu0 0
        %720 = vmatpush1.bf16.msra.mxu0 %v646
        %721 = vmatprep.subr.bf16.mxu0 0
        %722 = vmatpush1.bf16.msra.mxu0 %v645
        %723 = vmatprep.subr.bf16.mxu0 0
        %724 = vmatpush1.bf16.msra.mxu0 %v644
        %725 = vmatprep.subr.bf16.mxu0 0
        %726 = vmatpush1.bf16.msra.mxu0 %v643
        %727 = vmatprep.subr.bf16.mxu0 0
        %728 = vmatpush1.bf16.msra.mxu0 %v642
        %729 = vmatprep.subr.bf16.mxu0 0
        %730 = vmatpush1.bf16.msra.mxu0 %v641
        %731 = vmatprep.subr.bf16.mxu0 0
        %732 = vmatpush1.bf16.msra.mxu0 %v640
        %733 = vmatprep.subr.bf16.mxu0 0
        %734 = vmatpush1.bf16.msra.mxu0 %v639
        %735 = vmatprep.subr.bf16.mxu0 0
        %736 = vmatpush2.bf16.msra.mxu0 %v654
        %737 = vmatprep.subr.bf16.mxu0 0
        %738 = vmatpush2.bf16.msra.mxu0 %v653
        %739 = vmatprep.subr.bf16.mxu0 0
        %740 = vmatpush2.bf16.msra.mxu0 %v652
        %741 = vmatprep.subr.bf16.mxu0 0
        %742 = vmatpush2.bf16.msra.mxu0 %v651
        %743 = vmatprep.subr.bf16.mxu0 0
        %744 = vmatpush2.bf16.msra.mxu0 %v650
        %745 = vmatprep.subr.bf16.mxu0 0
        %746 = vmatpush2.bf16.msra.mxu0 %v649
        %747 = vmatprep.subr.bf16.mxu0 0
        %748 = vmatpush2.bf16.msra.mxu0 %v648
        %749 = vmatprep.subr.bf16.mxu0 0
        %750 = vmatpush2.bf16.msra.mxu0 %v647
        %751 = vmatprep.mubr.bf16.mxu0 %v370
        %752 = vmatmul.mubr.bf16.gmra.mxu0 %v363
        %v753 = vpop.f32.mrf.mxu0
        %v754 = vadd.f32 %v477, %v753
        %v755 = vpop.f32.mrf.mxu0
        %v756 = vpop.f32.mrf.mxu0
        %v757 = vpop.f32.mrf.mxu0
        %758 = vdwg.mxu0
        %759 = vmatprep.subr.bf16.mxu0 0
        %760 = vmatpush1.bf16.msra.mxu0 %v662
        %761 = vmatprep.subr.bf16.mxu0 0
        %762 = vmatpush1.bf16.msra.mxu0 %v661
        %763 = vmatprep.subr.bf16.mxu0 0
        %764 = vmatpush1.bf16.msra.mxu0 %v660
        %765 = vmatprep.subr.bf16.mxu0 0
        %766 = vmatpush1.bf16.msra.mxu0 %v659
        %767 = vmatprep.subr.bf16.mxu0 0
        %768 = vmatpush1.bf16.msra.mxu0 %v658
        %769 = vmatprep.subr.bf16.mxu0 0
        %770 = vmatpush1.bf16.msra.mxu0 %v657
        %771 = vmatprep.subr.bf16.mxu0 0
        %772 = vmatpush1.bf16.msra.mxu0 %v656
        %773 = vmatprep.subr.bf16.mxu0 0
        %774 = vmatpush1.bf16.msra.mxu0 %v655
        %775 = vmatprep.subr.bf16.mxu0 0
        %776 = vmatpush2.bf16.msra.mxu0 %v670
        %777 = vmatprep.subr.bf16.mxu0 0
        %778 = vmatpush2.bf16.msra.mxu0 %v669
        %779 = vmatprep.subr.bf16.mxu0 0
        %780 = vmatpush2.bf16.msra.mxu0 %v668
        %781 = vmatprep.subr.bf16.mxu0 0
        %782 = vmatpush2.bf16.msra.mxu0 %v667
        %783 = vmatprep.subr.bf16.mxu0 0
        %784 = vmatpush2.bf16.msra.mxu0 %v666
        %785 = vmatprep.subr.bf16.mxu0 0
        %786 = vmatpush2.bf16.msra.mxu0 %v665
        %787 = vmatprep.subr.bf16.mxu0 0
        %788 = vmatpush2.bf16.msra.mxu0 %v664
        %789 = vmatprep.subr.bf16.mxu0 0
        %790 = vmatpush2.bf16.msra.mxu0 %v663
        %791 = vmatprep.mubr.bf16.mxu0 %v384
        %792 = vmatmul.mubr.bf16.gmra.mxu0 %v377
        %v793 = vpop.f32.mrf.mxu0
        %v794 = vadd.f32 %v754, %v793
        %v795 = vpop.f32.mrf.mxu0
        %v796 = vpop.f32.mrf.mxu0
        %v797 = vpop.f32.mrf.mxu0
        %798 = vdwg.mxu0
        %799 = vmatprep.subr.bf16.mxu0 0
        %800 = vmatpush1.bf16.msra.mxu0 %v678
        %801 = vmatprep.subr.bf16.mxu0 0
        %802 = vmatpush1.bf16.msra.mxu0 %v677
        %803 = vmatprep.subr.bf16.mxu0 0
        %804 = vmatpush1.bf16.msra.mxu0 %v676
        %805 = vmatprep.subr.bf16.mxu0 0
        %806 = vmatpush1.bf16.msra.mxu0 %v675
        %807 = vmatprep.subr.bf16.mxu0 0
        %808 = vmatpush1.bf16.msra.mxu0 %v674
        %809 = vmatprep.subr.bf16.mxu0 0
        %810 = vmatpush1.bf16.msra.mxu0 %v673
        %811 = vmatprep.subr.bf16.mxu0 0
        %812 = vmatpush1.bf16.msra.mxu0 %v672
        %813 = vmatprep.subr.bf16.mxu0 0
        %814 = vmatpush1.bf16.msra.mxu0 %v671
        %815 = vmatprep.subr.bf16.mxu0 0
        %816 = vmatpush2.bf16.msra.mxu0 0
        %817 = vmatprep.subr.bf16.mxu0 0
        %818 = vmatpush2.bf16.msra.mxu0 0
        %819 = vmatprep.subr.bf16.mxu0 0
        %820 = vmatpush2.bf16.msra.mxu0 0
        %821 = vmatprep.subr.bf16.mxu0 0
        %822 = vmatpush2.bf16.msra.mxu0 0
        %823 = vmatprep.subr.bf16.mxu0 0
        %824 = vmatpush2.bf16.msra.mxu0 0
        %825 = vmatprep.subr.bf16.mxu0 0
        %826 = vmatpush2.bf16.msra.mxu0 0
        %827 = vmatprep.subr.bf16.mxu0 0
        %828 = vmatpush2.bf16.msra.mxu0 0
        %829 = vmatprep.subr.bf16.mxu0 0
        %830 = vmatpush2.bf16.msra.mxu0 0
        %831 = vmatprep.mubr.bf16.mxu0 0
        %832 = vmatmul.mubr.bf16.gmra.mxu0 %v391
        %v833 = vpop.f32.mrf.mxu0
        %v834 = vadd.f32 %v794, %v833
        %v835 = vpop.f32.mrf.mxu0
        %v836 = vpop.f32.mrf.mxu0
        %v837 = vpop.f32.mrf.mxu0
        %838 = vdwg.mxu0
        %v839 = vmax.f32 %v834, 0.0
        %v840 = vpack.c.bf16 %v839, %v839
        %v841 = vld [vmem:[#allocation5] sm:$0xf]
        %v842 = vld [vmem:[#allocation5 + $0x4] sm:$0xf]
        %v843 = vld [vmem:[#allocation5 + $0x8] sm:$0xf]
        %v844 = vld [vmem:[#allocation5 + $0xc] sm:$0xf]
        %v845 = vld [vmem:[#allocation5 + $0x10] sm:$0xf]
        %v846 = vld [vmem:[#allocation5 + $0x14] sm:$0xf]
        %v847 = vld [vmem:[#allocation5 + $0x18] sm:$0xf]
        %v848 = vld [vmem:[#allocation5 + $0x1c] sm:$0xf]
        %v849 = vld [vmem:[#allocation5 + $0x20] sm:$0xf]
        %v850 = vld [vmem:[#allocation5 + $0x24] sm:$0xf]
        %v851 = vld [vmem:[#allocation5 + $0x28] sm:$0xf]
        %v852 = vld [vmem:[#allocation5 + $0x2c] sm:$0xf]
        %v853 = vld [vmem:[#allocation5 + $0x30] sm:$0xf]
        %v854 = vld [vmem:[#allocation5 + $0x34] sm:$0xf]
        %v855 = vld [vmem:[#allocation5 + $0x38] sm:$0xf]
        %v856 = vld [vmem:[#allocation5 + $0x3c] sm:$0xf]
        %v857 = vld [vmem:[%s4] sm:$0x1]
        %v859 = vlaneseq
        %v860 = vshrl.u32 %v859, 7
        %v861 = vsub.s32 0, %v860
        %v862 = vrot.slane %v857, %v861
        %v880 = vunpack.c.l.b16 %v841
        %v881 = vunpack.c.l.b16 %v842
        %v882 = vunpack.c.l.b16 %v843
        %v883 = vunpack.c.l.b16 %v844
        %v884 = vunpack.c.l.b16 %v845
        %v885 = vunpack.c.l.b16 %v846
        %v886 = vunpack.c.l.b16 %v847
        %v887 = vunpack.c.l.b16 %v848
        %v888 = vunpack.c.l.b16 %v849
        %v889 = vunpack.c.l.b16 %v850
        %v890 = vunpack.c.l.b16 %v851
        %v891 = vunpack.c.l.b16 %v852
        %v892 = vunpack.c.l.b16 %v853
        %v893 = vunpack.c.l.b16 %v854
        %v894 = vunpack.c.l.b16 %v855
        %v895 = vunpack.c.l.b16 %v856
        %v896 = vpack.c.b16 %v881, %v880
        %v897 = vpack.c.b16 %v883, %v882
        %v898 = vpack.c.b16 %v885, %v884
        %v899 = vpack.c.b16 %v887, %v886
        %v900 = vpack.c.b16 %v889, %v888
        %v901 = vpack.c.b16 %v891, %v890
        %v902 = vpack.c.b16 %v893, %v892
        %v903 = vpack.c.b16 %v895, %v894
        %912 = vmatprep.subr.bf16.mxu0 0
        %913 = vmatpush1.bf16.msra.mxu0 %v903
        %914 = vmatprep.subr.bf16.mxu0 0
        %915 = vmatpush1.bf16.msra.mxu0 %v902
        %916 = vmatprep.subr.bf16.mxu0 0
        %917 = vmatpush1.bf16.msra.mxu0 %v901
        %918 = vmatprep.subr.bf16.mxu0 0
        %919 = vmatpush1.bf16.msra.mxu0 %v900
        %920 = vmatprep.subr.bf16.mxu0 0
        %921 = vmatpush1.bf16.msra.mxu0 %v899
        %922 = vmatprep.subr.bf16.mxu0 0
        %923 = vmatpush1.bf16.msra.mxu0 %v898
        %924 = vmatprep.subr.bf16.mxu0 0
        %925 = vmatpush1.bf16.msra.mxu0 %v897
        %926 = vmatprep.subr.bf16.mxu0 0
        %927 = vmatpush1.bf16.msra.mxu0 %v896
        %928 = vmatprep.subr.bf16.mxu0 0
        %929 = vmatpush2.bf16.msra.mxu0 0
        %930 = vmatprep.subr.bf16.mxu0 0
        %931 = vmatpush2.bf16.msra.mxu0 0
        %932 = vmatprep.subr.bf16.mxu0 0
        %933 = vmatpush2.bf16.msra.mxu0 0
        %934 = vmatprep.subr.bf16.mxu0 0
        %935 = vmatpush2.bf16.msra.mxu0 0
        %936 = vmatprep.subr.bf16.mxu0 0
        %937 = vmatpush2.bf16.msra.mxu0 0
        %938 = vmatprep.subr.bf16.mxu0 0
        %939 = vmatpush2.bf16.msra.mxu0 0
        %940 = vmatprep.subr.bf16.mxu0 0
        %941 = vmatpush2.bf16.msra.mxu0 0
        %942 = vmatprep.subr.bf16.mxu0 0
        %943 = vmatpush2.bf16.msra.mxu0 0
        %944 = vmatprep.mubr.bf16.mxu0 0
        %945 = vmatmul.mubr.bf16.gmra.mxu0 %v840
        %v946 = vpop.f32.mrf.mxu0
        %v947 = vadd.f32 %v862, %v946
        %v948 = vpop.f32.mrf.mxu0
        %v949 = vpop.f32.mrf.mxu0
        %v950 = vpop.f32.mrf.mxu0
        %951 = vdwg.mxu0
        %v952 = vmax.f32 %v947, 0.0
        %v953 = vpack.c.bf16 %v952, %v952
        %v954 = vld [vmem:[#allocation7] sm:$0xf]
        %v955 = vld [vmem:[#allocation7 + $0x4] sm:$0xf]
        %v956 = vld [vmem:[#allocation7 + $0x8] sm:$0xf]
        %v957 = vld [vmem:[#allocation7 + $0xc] sm:$0xf]
        %v958 = vld [vmem:[#allocation7 + $0x10] sm:$0xf]
        %v959 = vld [vmem:[#allocation7 + $0x14] sm:$0xf]
        %v960 = vld [vmem:[#allocation7 + $0x18] sm:$0xf]
        %v961 = vld [vmem:[#allocation7 + $0x1c] sm:$0xf]
        %v962 = vld [vmem:[#allocation7 + $0x20] sm:$0xf]
        %v963 = vld [vmem:[#allocation7 + $0x24] sm:$0xf]
        %v964 = vld [vmem:[#allocation7 + $0x28] sm:$0xf]
        %v965 = vld [vmem:[#allocation7 + $0x2c] sm:$0xf]
        %v966 = vld [vmem:[#allocation7 + $0x30] sm:$0xf]
        %v967 = vld [vmem:[#allocation7 + $0x34] sm:$0xf]
        %v968 = vld [vmem:[#allocation7 + $0x38] sm:$0xf]
        %v969 = vld [vmem:[#allocation7 + $0x3c] sm:$0xf]
        %v970 = vld [vmem:[%s352] sm:$0x1]
        %v972 = vlaneseq
        %v973 = vshrl.u32 %v972, 7
        %v974 = vsub.s32 0, %v973
        %v975 = vrot.slane %v970, %v974
        %v993 = vunpack.c.l.b16 %v954
        %v994 = vunpack.c.l.b16 %v955
        %v995 = vunpack.c.l.b16 %v956
        %v996 = vunpack.c.l.b16 %v957
        %v997 = vunpack.c.l.b16 %v958
        %v998 = vunpack.c.l.b16 %v959
        %v999 = vunpack.c.l.b16 %v960
        %v1000 = vunpack.c.l.b16 %v961
        %v1001 = vunpack.c.l.b16 %v962
        %v1002 = vunpack.c.l.b16 %v963
        %v1003 = vunpack.c.l.b16 %v964
        %v1004 = vunpack.c.l.b16 %v965
        %v1005 = vunpack.c.l.b16 %v966
        %v1006 = vunpack.c.l.b16 %v967
        %v1007 = vunpack.c.l.b16 %v968
        %v1008 = vunpack.c.l.b16 %v969
        %v1009 = vpack.c.b16 %v994, %v993
        %v1010 = vpack.c.b16 %v996, %v995
        %v1011 = vpack.c.b16 %v998, %v997
        %v1012 = vpack.c.b16 %v1000, %v999
        %v1013 = vpack.c.b16 %v1002, %v1001
        %v1014 = vpack.c.b16 %v1004, %v1003
        %v1015 = vpack.c.b16 %v1006, %v1005
        %v1016 = vpack.c.b16 %v1008, %v1007
        %1025 = vmatprep.subr.bf16.mxu0 0
        %1026 = vmatpush1.bf16.msra.mxu0 %v1016
        %1027 = vmatprep.subr.bf16.mxu0 0
        %1028 = vmatpush1.bf16.msra.mxu0 %v1015
        %1029 = vmatprep.subr.bf16.mxu0 0
        %1030 = vmatpush1.bf16.msra.mxu0 %v1014
        %1031 = vmatprep.subr.bf16.mxu0 0
        %1032 = vmatpush1.bf16.msra.mxu0 %v1013
        %1033 = vmatprep.subr.bf16.mxu0 0
        %1034 = vmatpush1.bf16.msra.mxu0 %v1012
        %1035 = vmatprep.subr.bf16.mxu0 0
        %1036 = vmatpush1.bf16.msra.mxu0 %v1011
        %1037 = vmatprep.subr.bf16.mxu0 0
        %1038 = vmatpush1.bf16.msra.mxu0 %v1010
        %1039 = vmatprep.subr.bf16.mxu0 0
        %1040 = vmatpush1.bf16.msra.mxu0 %v1009
        %1041 = vmatprep.subr.bf16.mxu0 0
        %1042 = vmatpush2.bf16.msra.mxu0 0
        %1043 = vmatprep.subr.bf16.mxu0 0
        %1044 = vmatpush2.bf16.msra.mxu0 0
        %1045 = vmatprep.subr.bf16.mxu0 0
        %1046 = vmatpush2.bf16.msra.mxu0 0
        %1047 = vmatprep.subr.bf16.mxu0 0
        %1048 = vmatpush2.bf16.msra.mxu0 0
        %1049 = vmatprep.subr.bf16.mxu0 0
        %1050 = vmatpush2.bf16.msra.mxu0 0
        %1051 = vmatprep.subr.bf16.mxu0 0
        %1052 = vmatpush2.bf16.msra.mxu0 0
        %1053 = vmatprep.subr.bf16.mxu0 0
        %1054 = vmatpush2.bf16.msra.mxu0 0
        %1055 = vmatprep.subr.bf16.mxu0 0
        %1056 = vmatpush2.bf16.msra.mxu0 0
        %1057 = vmatprep.mubr.bf16.mxu0 0
        %1058 = vmatmul.mubr.bf16.gmra.mxu0 %v953
        %v1059 = vpop.f32.mrf.mxu0
        %v1060 = vadd.f32 %v975, %v1059
        %v1061 = vpop.f32.mrf.mxu0
        %v1062 = vpop.f32.mrf.mxu0
        %v1063 = vpop.f32.mrf.mxu0
        %1064 = vdwg.mxu0
        %1065 = vst [vmem:[%s345] sm:$0xff] %v1060
        %s1066 = sand.u32 %s207, 1
        %s1067 = scalar_lea.sflag [#allocation4], %s1066
        %s1068 = sand.u32 %s207, 1
        %s1069 = smul.addr %s1068, 8
        %s1070 = scalar_lea.vmem [#allocation8], %s1069
        // Predicated region
        $region61: #{tpu_custom_call.1} parent=47 // pred_check
          %p1071 = pneg %p217
        $region62: #{tpu_custom_call.1} parent=47 // pred_check_branch
          %1073 = sbr.rel (%p1071) target = $region64
        $region63: #{tpu_custom_call.1} parent=47 // pred_region
          %s1075 = ssub.s32 128, 128
          %1076 = vsyncadd %s1067, %s1075
          %s1077 = sadd.s32 %s27, %s28
          %s1078 = smul.addr %s1077, 128
          %s1079 = scalar_lea.hbm %s7, %s1078
          %s1081 = sshll.u32 %s1070, 4
          %s1082 = int_to_ptr.vmem [resolvable:$true] %s1081
          %1084 = dma.vmem_to_hbm [thread:$0]  %s1082, 128, %s1079, %s1067
        $region64: #{tpu_custom_call.1} parent=47 // pred_fallthru
          _
      $region48: #{tpu_custom_call.1} parent=5 // pred_fallthru
        _
      %p1085 = scmp.le.s32.totalorder 2, %s18
      // Predicated region
      $region65: #{tpu_custom_call.1} parent=5 // pred_check
        %p1086 = pneg %p1085
      $region66: #{tpu_custom_call.1} parent=5 // pred_check_branch
        %1088 = sbr.rel (%p1086) target = $region68
      $region67: #{tpu_custom_call.1} parent=5 // pred_region
        %s1089 = ssub.s32 %s18, 2
        // Predicated region
        $region69: #{tpu_custom_call.1} parent=67 // pred_check
          %p1090 = pneg %p223
        $region70: #{tpu_custom_call.1} parent=67 // pred_check_branch
          %1092 = sbr.rel (%p1090) target = $region72
        $region71: #{tpu_custom_call.1} parent=67 // pred_region
          %s1093 = sand.u32 %s208, 1
          %s1094 = scalar_lea.sflag [#allocation4], %s1093
          %s1095 = sand.u32 %s208, 1
          %s1096 = smul.addr %s1095, 8
          %s1097 = scalar_lea.vmem [#allocation8], %s1096
          %1098 = dma.done %s1094, 128
        $region72: #{tpu_custom_call.1} parent=67 // pred_fallthru
          _
      $region68: #{tpu_custom_call.1} parent=5 // pred_fallthru
        _
    $region6: #{tpu_custom_call.1} parent=1 // loop_footer
      %s22 = sadd.s32 1, %s18
    $region7: #{tpu_custom_call.1} parent=1 // loop_footer_branch
      %17 = sbr.rel target = $region3
    $region8: #{tpu_custom_call.1} parent=1 // loop_exit
      _
    %1099 = vsyncpa [#allocation3], 1
    %s1100 = scalar_lea.sflag [#allocation3], 1
    %1101 = vsyncpa %s1100, 1
    %1102 = vsyncpa [#allocation6], 1
    %1103 = vsyncpa [#allocation4], 1
    %s1104 = scalar_lea.sflag [#allocation4], 1
    %1105 = vsyncpa %s1104, 1

</llo_original>
